<compile_context>
chip_gen: v5e
topology: v5e:2x2
jax: 0.10.0
libtpu: 0.0.40
codegen_flags: <defaults>
</compile_context>

<pallas_src>
import functools

import jax
import jax.numpy as jnp
from jax import lax
from jax.experimental import pallas as pl
from jax.experimental.pallas import tpu as pltpu


def _series_decomp_kernel(x_ref, res_ref, mean_ref, *, kernel_size, pad, C,
                          row_chunk):
    # x_ref / res_ref / mean_ref: (TB, N) with N = L*C (lane-dense flat layout).
    TB, N = x_ref.shape
    L = N // C
    num_chunks = TB // row_chunk
    inv_k = 1.0 / float(kernel_size)

    # Lane-position iota for the edge masks; shared by every chunk (hoisted).
    pos = lax.broadcasted_iota(jnp.int32, (row_chunk, N), 1)

    def chunk_body(i, carry):
        r = pl.multiple_of(i * row_chunk, row_chunk)
        rows = pl.ds(r, row_chunk)
        x = x_ref[rows, :].astype(jnp.float32)          # (row_chunk, N)

        # Replicate-padding fill values:
        #   frontf correct (== x[:, 0, :])   on at least the first `need` groups
        #   endf   correct (== x[:, L-1, :]) on at least the last  `need` groups
        # built with log2(pad) lane rotations + selects (no scratch, no slices).
        need = min(pad, L)
        frontf = x
        endf = x
        good = 1
        while good < need:
            sh = good * C                               # shift by `good` timesteps
            frontf = jnp.where(pos < sh, frontf,
                               pltpu.roll(frontf, sh, axis=1))
            endf = jnp.where(pos >= N - sh, endf,
                             pltpu.roll(endf, N - sh, axis=1))
            good *= 2

        # k-tap sliding-window sum.  Tap +-j is a rotation by j*C lanes; the
        # wrapped region is replaced by the replicate-padding fill.  The
        # center tap reuses the x value already in registers.
        acc = x
        for j in range(1, pad + 1):
            if j >= L:
                # Window reaches fully past both ends (degenerate k >= 2L+1).
                acc = acc + endf + frontf
                continue
            s = j * C
            plus = pltpu.roll(x, N - s, axis=1)         # plus[i]  = x[i + s]
            plus = jnp.where(pos >= N - s, endf, plus)  # replicate last step
            minus = pltpu.roll(x, s, axis=1)            # minus[i] = x[i - s]
            minus = jnp.where(pos < s, frontf, minus)   # replicate first step
            acc = acc + plus + minus

        mean = acc * inv_k
        mean_ref[rows, :] = mean.astype(mean_ref.dtype)
        res_ref[rows, :] = (x - mean).astype(res_ref.dtype)
        return carry

    lax.fori_loop(0, num_chunks, chunk_body, 0, unroll=num_chunks <= 4)


def _vmem_budget():
    """(per-block VMEM budget, explicit vmem_limit_bytes), generation-aware."""
    try:
        cap = int(pltpu.get_tpu_info().vmem_capacity_bytes)
    except Exception:
        cap = 64 * 1024 * 1024           # conservative fallback (v7x per-core)
    # v5e/v6e (128 MiB physical) -> 48 MiB scoped limit; v7x (64 MiB) -> 32 MiB.
    vmem_limit = min(cap // 2, 48 * 1024 * 1024)
    budget = (vmem_limit * 3) // 4       # headroom for Mosaic internals
    return budget, vmem_limit


def _choose_batch_tile(B, N, itemsize, budget):
    """Rows of the flat (B, N) array processed per grid step (dtype-aware)."""
    if B < 16:
        # One block; batch == full array dim keeps the sublane-tiling rule
        # satisfied for any B.  TODO(synk): L-split halo for v7x megacore.
        return B
    n_lanes = pl.cdiv(N, 128) * 128
    # Pipelined refs: input x2 (double buffer) + two outputs x2, input dtype.
    row_bytes = 6 * n_lanes * itemsize
    # f32 temporaries of one 8-row chunk (x, fills, taps, acc, mean, iota).
    chunk_bytes = 8 * 8 * n_lanes * 4
    tb = (budget - chunk_bytes) // row_bytes
    tb = max(8, (int(tb) // 8) * 8)
    # Keep >= 2 grid steps so both v7x TensorCores get work and output
    # writeback of step i-1 overlaps the input DMA of step i+1.
    cap = max(8, ((-(-B // 2)) // 8) * 8)
    return int(min(tb, cap))


def series_decomp(x, kernel_size):
    """x: (B, L, C). Returns (res, moving_mean), each (B, L, C)."""
    B, L, C = x.shape
    # Even kernel_size would change the output length (the PyTorch module is
    # only used with odd kernel_size).
    assert kernel_size % 2 == 1, "series_decomp requires odd kernel_size"
    pad = (kernel_size - 1) // 2
    N = L * C

    # Free row-major collapse -> lane-dense layout (N on the 128-lane axis).
    x_flat = x.reshape(B, N)

    itemsize = jnp.dtype(x.dtype).itemsize
    budget, vmem_limit = _vmem_budget()
    TB = _choose_batch_tile(B, N, itemsize, budget)
    row_chunk = 8 if TB % 8 == 0 else TB
    grid = (pl.cdiv(B, TB),)

    kernel = functools.partial(
        _series_decomp_kernel,
        kernel_size=kernel_size, pad=pad, C=C, row_chunk=row_chunk)

    res, mean = pl.pallas_call(
        kernel,
        out_shape=(
            jax.ShapeDtypeStruct((B, N), x.dtype),
            jax.ShapeDtypeStruct((B, N), x.dtype),
        ),
        grid_spec=pltpu.PrefetchScalarGridSpec(
            num_scalar_prefetch=0,
            grid=grid,
            in_specs=[
                pl.BlockSpec((TB, N), lambda b: (b, 0)),
            ],
            out_specs=[
                pl.BlockSpec((TB, N), lambda b: (b, 0)),
                pl.BlockSpec((TB, N), lambda b: (b, 0)),
            ],
        ),
        compiler_params=pltpu.CompilerParams(
            dimension_semantics=("parallel",),
            vmem_limit_bytes=int(vmem_limit),
        ),
    )(x_flat)
    return res.reshape(B, L, C), mean.reshape(B, L, C)


def _reference(x, kernel_size):
    """Pure-JAX reference matching the PyTorch forward exactly."""
    pad = (kernel_size - 1) // 2
    front = jnp.repeat(x[:, 0:1, :], pad, axis=1)
    end = jnp.repeat(x[:, -1:, :], pad, axis=1)
    xp = jnp.concatenate([front, x, end], axis=1)
    L = x.shape[1]
    windows = jnp.stack([xp[:, j:j + L, :] for j in range(kernel_size)], axis=0)
    mean = jnp.mean(windows, axis=0)
    return x - mean, mean


if __name__ == "__main__":
    key = jax.random.PRNGKey(0)
    configs = [
        (16, 32, 8, 5),    # B >= 16: 2 grid blocks (v7x megacore), 8-row chunks
        (4, 32, 8, 7),     # tiny batch: single full-batch block
        (8, 64, 8, 25),    # typical decomposition kernel size (25 taps)
    ]
    for i, (B, L, C, k) in enumerate(configs):
        x = jax.random.normal(jax.random.fold_in(key, i), (B, L, C),
                              dtype=jnp.float32)
        res, mean = series_decomp(x, k)
        res = jax.block_until_ready(res)
        mean = jax.block_until_ready(mean)

        res_ref, mean_ref = _reference(x, k)
        assert jnp.allclose(mean, mean_ref, atol=1e-5, rtol=1e-5)
        assert jnp.allclose(res, res_ref, atol=1e-5, rtol=1e-5)

    print("KERNEL_OK")
</pallas_src>

<mosaic_0001>
module attributes {stable_mosaic.version = 11 : i64} {
  func.func @_series_decomp_kernel(%arg0: i32, %arg1: memref<8x256xf32, #tpu.memory_space<vmem>>, %arg2: memref<8x256xf32, #tpu.memory_space<vmem>>, %arg3: memref<8x256xf32, #tpu.memory_space<vmem>>) attributes {dimension_semantics = [#tpu.dimension_semantics<parallel>], iteration_bounds = array<i64: 2>, scalar_prefetch = 0 : i64, scratch_operands = 0 : i64, tpu.core_type = #tpu.core_type<tc>, window_params = [{transform_indices = @transform_0, window_bounds = array<i64: 8, 256>}, {transform_indices = @transform_1, window_bounds = array<i64: 8, 256>}, {transform_indices = @transform_2, window_bounds = array<i64: 8, 256>}]} {
    %0 = tpu.iota {dimensions = array<i32: 1>} : vector<8x256xi32>
    %c0_i32 = arith.constant 0 : i32
    %c8_i32 = arith.constant 8 : i32
    %1 = arith.muli %c0_i32, %c8_i32 : i32
    %2 = tpu.assume_multiple %1, 8 : i32
    %3 = arith.index_cast %2 : i32 to index
    %c0 = arith.constant 0 : index
    %4 = vector.load %arg1[%3, %c0] : memref<8x256xf32, #tpu.memory_space<vmem>>, vector<8x256xf32>
    %c8_i32_0 = arith.constant 8 : i32
    %5 = vector.broadcast %c8_i32_0 : i32 to vector<8x256xi32>
    %6 = arith.cmpi slt, %0, %5 : vector<8x256xi32>
    %c8_i32_1 = arith.constant 8 : i32
    %7 = tpu.dynamic_rotate %4 by %c8_i32_1 dim 1 : vector<8x256xf32>, i32 -> vector<8x256xf32>
    %8 = arith.select %6, %4, %7 : vector<8x256xi1>, vector<8x256xf32>
    %c248_i32 = arith.constant 248 : i32
    %9 = vector.broadcast %c248_i32 : i32 to vector<8x256xi32>
    %10 = arith.cmpi sge, %0, %9 : vector<8x256xi32>
    %c248_i32_2 = arith.constant 248 : i32
    %11 = tpu.dynamic_rotate %4 by %c248_i32_2 dim 1 : vector<8x256xf32>, i32 -> vector<8x256xf32>
    %12 = arith.select %10, %4, %11 : vector<8x256xi1>, vector<8x256xf32>
    %c248_i32_3 = arith.constant 248 : i32
    %13 = tpu.dynamic_rotate %4 by %c248_i32_3 dim 1 : vector<8x256xf32>, i32 -> vector<8x256xf32>
    %c248_i32_4 = arith.constant 248 : i32
    %14 = vector.broadcast %c248_i32_4 : i32 to vector<8x256xi32>
    %15 = arith.cmpi sge, %0, %14 : vector<8x256xi32>
    %16 = arith.select %15, %12, %13 : vector<8x256xi1>, vector<8x256xf32>
    %c8_i32_5 = arith.constant 8 : i32
    %17 = tpu.dynamic_rotate %4 by %c8_i32_5 dim 1 : vector<8x256xf32>, i32 -> vector<8x256xf32>
    %c8_i32_6 = arith.constant 8 : i32
    %18 = vector.broadcast %c8_i32_6 : i32 to vector<8x256xi32>
    %19 = arith.cmpi slt, %0, %18 : vector<8x256xi32>
    %20 = arith.select %19, %8, %17 : vector<8x256xi1>, vector<8x256xf32>
    %21 = arith.addf %4, %16 : vector<8x256xf32>
    %22 = arith.addf %21, %20 : vector<8x256xf32>
    %c240_i32 = arith.constant 240 : i32
    %23 = tpu.dynamic_rotate %4 by %c240_i32 dim 1 : vector<8x256xf32>, i32 -> vector<8x256xf32>
    %c240_i32_7 = arith.constant 240 : i32
    %24 = vector.broadcast %c240_i32_7 : i32 to vector<8x256xi32>
    %25 = arith.cmpi sge, %0, %24 : vector<8x256xi32>
    %26 = arith.select %25, %12, %23 : vector<8x256xi1>, vector<8x256xf32>
    %c16_i32 = arith.constant 16 : i32
    %27 = tpu.dynamic_rotate %4 by %c16_i32 dim 1 : vector<8x256xf32>, i32 -> vector<8x256xf32>
    %c16_i32_8 = arith.constant 16 : i32
    %28 = vector.broadcast %c16_i32_8 : i32 to vector<8x256xi32>
    %29 = arith.cmpi slt, %0, %28 : vector<8x256xi32>
    %30 = arith.select %29, %8, %27 : vector<8x256xi1>, vector<8x256xf32>
    %31 = arith.addf %22, %26 : vector<8x256xf32>
    %32 = arith.addf %31, %30 : vector<8x256xf32>
    %cst = arith.constant 2.000000e-01 : f32
    %33 = vector.broadcast %cst : f32 to vector<8x256xf32>
    %34 = arith.mulf %32, %33 : vector<8x256xf32>
    %35 = arith.index_cast %2 : i32 to index
    %c0_9 = arith.constant 0 : index
    %36 = vector.load %arg3[%35, %c0_9] : memref<8x256xf32, #tpu.memory_space<vmem>>, vector<8x256xf32>
    tpu.vector_store %arg3[%35, %c0_9], %34 {strides = array<i32>} : memref<8x256xf32, #tpu.memory_space<vmem>>, vector<8x256xf32>,
    %37 = arith.subf %4, %34 : vector<8x256xf32>
    %38 = arith.index_cast %2 : i32 to index
    %c0_10 = arith.constant 0 : index
    %39 = vector.load %arg2[%38, %c0_10] : memref<8x256xf32, #tpu.memory_space<vmem>>, vector<8x256xf32>
    tpu.vector_store %arg2[%38, %c0_10], %37 {strides = array<i32>} : memref<8x256xf32, #tpu.memory_space<vmem>>, vector<8x256xf32>,
    %c1_i32 = arith.constant 1 : i32
    return
  }
  func.func @transform_0(%arg0: i32) -> (i32, i32) {
    %c0_i32 = arith.constant 0 : i32
    %c0_i32_0 = arith.constant 0 : i32
    return %arg0, %c0_i32 : i32, i32
  }
  func.func @transform_1(%arg0: i32) -> (i32, i32) {
    %c0_i32 = arith.constant 0 : i32
    %c0_i32_0 = arith.constant 0 : i32
    return %arg0, %c0_i32 : i32, i32
  }
  func.func @transform_2(%arg0: i32) -> (i32, i32) {
    %c0_i32 = arith.constant 0 : i32
    %c0_i32_0 = arith.constant 0 : i32
    return %arg0, %c0_i32 : i32, i32
  }
}

</mosaic_0001>

<llo_original>
// kernel: tpu_custom_call.1
$region0: #{tpu_custom_call.1}
  #allocation0 [shape = 'u32[]', space=smem, size = 0x4, offset = 0x4, fixed_abs, tag = 'smem constant byte address 0x4 - core index']
  #allocation1 [shape = 'u32[72,128]{1,0:T(1,128)}', space=vmem, size = 0x9000, scoped, tag = 'internal scratch']
  %s0 = inlined_call_operand.hbm [shape: f32[16,256], index: 0, kind: input, shape index: {}]
  %s1 = inlined_call_operand.hbm [shape: f32[16,256], index: 1, kind: output, shape index: {0}]
  %s2 = inlined_call_operand.hbm [shape: f32[16,256], index: 2, kind: output, shape index: {1}]
  %3 = xla_tuple %s1, %s2
  %s4 = sld [smem:[#allocation0]]
  $region49: #{tpu_custom_call.1} parent=0
    _
  %s6 = ssub.s32 1, %s4
  %s7 = scalar_select 0, %s6, %s4
  $region1: #{tpu_custom_call.1} parent=0
    #allocation2 [shape = 'u8[16384]{0}', space=vmem, size = 0x4000, scoped, tag = 'input window, operand 0']
    #allocation3 [shape = 's32[2]{0}', space=sflag, size = 0x8, scoped, tag = 'scoped memory for tpu_custom_call.1']
    #allocation4 [shape = 's32[2]{0}', space=sflag, size = 0x8, scoped, tag = 'scoped memory for tpu_custom_call.1']
    #allocation5 [shape = 'u8[16384]{0}', space=vmem, size = 0x4000, scoped, tag = 'output window, operand 0']
    #allocation6 [shape = 'u8[16384]{0}', space=vmem, size = 0x4000, scoped, tag = 'output window, operand 1']
    #allocation7 [shape = 's32[2]{0}', space=sflag, size = 0x8, scoped, tag = 'scoped memory for tpu_custom_call.1']
    %8 = vsyncpa [#allocation3], 0
    %s9 = scalar_lea.sflag [#allocation3], 1
    %10 = vsyncpa %s9, 0
    %11 = vsyncpa [#allocation4], 0
    %s12 = scalar_lea.sflag [#allocation4], 1
    %13 = vsyncpa %s12, 0
    %14 = vsyncpa [#allocation7], 0
    %s15 = scalar_lea.sflag [#allocation7], 1
    %16 = vsyncpa %s15, 0
    loop: start=0, step=1, limit=4
    $region2: #{tpu_custom_call.1} parent=1 // loop_pre_header
      _
    $region3: #{tpu_custom_call.1} parent=1 // loop_header
      %s18 = sphi 0, %s22
      %p19 = scmp.ge.s32.totalorder %s18, 4
      %s28 = sphi 0, %s30
      %s31 = sphi 0, %s28
      %s32 = sphi 0, %s31
      %s48 = sphi 0, %s32
      %s54 = sphi 0, %s56
      %s57 = sphi 0, %s54
      %s58 = sphi 0, %s57
      %s74 = sphi 0, %s58
      %s80 = sphi 0, %s82
      %s83 = sphi 0, %s80
      %s84 = sphi 0, %s83
      %s100 = sphi 0, %s84
    $region4: #{tpu_custom_call.1} parent=1 // loop_header_branch
      %21 = sbr.rel (%p19) target = $region8
    $region5: #{tpu_custom_call.1} parent=1 // loop_body
      %s23 = ssub.s32 %s18, 1
      %s24 = ssub.s32 %s18, 2
      %s25 = sadd.s32 %s18, 1
      %s26 = ssub.s32 %s18, %s25
      %p27 = scmp.eq.s32.totalorder %s26, 0
      %s29 = sadd.s32 %s28, 1
      %s30 = scalar_select %p27, %s28, %s29
      %p33 = pneg %p27
      %p34 = scmp.eq.s32.totalorder %s18, 1
      %p35 = por %p33, %p34
      %p36 = scmp.ne.s32.totalorder %s28, %s31
      %p37 = scmp.eq.s32.totalorder %s18, 0
      %p38 = por %p36, %p37
      %p39 = scmp.ne.s32.totalorder %s28, %s31
      %p40 = scmp.eq.s32.totalorder %s23, 1
      %p41 = por %p39, %p40
      %p42 = scmp.ne.s32.totalorder %s31, %s32
      %p43 = scmp.eq.s32.totalorder %s23, 0
      %p44 = por %p42, %p43
      %p45 = scmp.ne.s32.totalorder %s31, %s32
      %p46 = scmp.eq.s32.totalorder %s24, 1
      %p47 = por %p45, %p46
      %p49 = scmp.ne.s32.totalorder %s32, %s48
      %p50 = scmp.eq.s32.totalorder %s24, 0
      %p51 = por %p49, %p50
      %s52 = ssub.s32 %s18, %s25
      %p53 = scmp.eq.s32.totalorder %s52, 0
      %s55 = sadd.s32 %s54, 1
      %s56 = scalar_select %p53, %s54, %s55
      %p59 = pneg %p53
      %p60 = scmp.eq.s32.totalorder %s18, 1
      %p61 = por %p59, %p60
      %p62 = scmp.ne.s32.totalorder %s54, %s57
      %p63 = scmp.eq.s32.totalorder %s18, 0
      %p64 = por %p62, %p63
      %p65 = scmp.ne.s32.totalorder %s54, %s57
      %p66 = scmp.eq.s32.totalorder %s23, 1
      %p67 = por %p65, %p66
      %p68 = scmp.ne.s32.totalorder %s57, %s58
      %p69 = scmp.eq.s32.totalorder %s23, 0
      %p70 = por %p68, %p69
      %p71 = scmp.ne.s32.totalorder %s57, %s58
      %p72 = scmp.eq.s32.totalorder %s24, 1
      %p73 = por %p71, %p72
      %p75 = scmp.ne.s32.totalorder %s58, %s74
      %p76 = scmp.eq.s32.totalorder %s24, 0
      %p77 = por %p75, %p76
      %s78 = ssub.s32 %s18, %s25
      %p79 = scmp.eq.s32.totalorder %s78, 0
      %s81 = sadd.s32 %s80, 1
      %s82 = scalar_select %p79, %s80, %s81
      %p85 = pneg %p79
      %p86 = scmp.eq.s32.totalorder %s18, 1
      %p87 = por %p85, %p86
      %p88 = scmp.ne.s32.totalorder %s80, %s83
      %p89 = scmp.eq.s32.totalorder %s18, 0
      %p90 = por %p88, %p89
      %p91 = scmp.ne.s32.totalorder %s80, %s83
      %p92 = scmp.eq.s32.totalorder %s23, 1
      %p93 = por %p91, %p92
      %p94 = scmp.ne.s32.totalorder %s83, %s84
      %p95 = scmp.eq.s32.totalorder %s23, 0
      %p96 = por %p94, %p95
      %p97 = scmp.ne.s32.totalorder %s83, %s84
      %p98 = scmp.eq.s32.totalorder %s24, 1
      %p99 = por %p97, %p98
      %p101 = scmp.ne.s32.totalorder %s84, %s100
      %p102 = scmp.eq.s32.totalorder %s24, 0
      %p103 = por %p101, %p102
      %p104 = scmp.le.s32.totalorder 1, %s18
      %p105 = scmp.lt.s32.totalorder %s18, 3
      %p106 = pnand %p104, %p105
      %p107 = pneg %p106
      // Predicated region
      $region9: #{tpu_custom_call.1} parent=5 // pred_check
        _
      $region10: #{tpu_custom_call.1} parent=5 // pred_check_branch
        %109 = sbr.rel (%p106) target = $region12
      $region11: #{tpu_custom_call.1} parent=5 // pred_region
        %s110 = ssub.s32 %s18, 1
      $region12: #{tpu_custom_call.1} parent=5 // pred_fallthru
        _
      %p111 = scmp.lt.s32.totalorder %s18, 2
      // Predicated region
      $region13: #{tpu_custom_call.1} parent=5 // pred_check
        %p112 = pneg %p111
      $region14: #{tpu_custom_call.1} parent=5 // pred_check_branch
        %114 = sbr.rel (%p112) target = $region16
      $region15: #{tpu_custom_call.1} parent=5 // pred_region
        // Predicated region
        $region17: #{tpu_custom_call.1} parent=15 // pred_check
          %p115 = pneg %p38
        $region18: #{tpu_custom_call.1} parent=15 // pred_check_branch
          %117 = sbr.rel (%p115) target = $region20
        $region19: #{tpu_custom_call.1} parent=15 // pred_region
          %s118 = sand.u32 %s28, 1
          %s119 = scalar_lea.sflag [#allocation3], %s118
          %s120 = sand.u32 %s28, 1
          %s121 = smul.addr %s120, 16
          %s122 = scalar_lea.vmem [#allocation2], %s121
          %124 = vsyncadd %s119, 0
          %s125 = smul.addr %s18, 2
          %s126 = smul.addr %s125, 8
          %s127 = scalar_lea.hbm %s0, %s126
          %s129 = sshll.u32 %s127, 4
          %s130 = int_to_ptr.hbm [resolvable:$true] %s129
          %s131 = sshll.u32 %s122, 4
          %s132 = int_to_ptr.vmem [resolvable:$true] %s131
          %134 = dma.hbm_to_vmem [thread:$0]  %s130, 256, %s132, %s119
        $region20: #{tpu_custom_call.1} parent=15 // pred_fallthru
          _
      $region16: #{tpu_custom_call.1} parent=5 // pred_fallthru
        _
      %p135 = scmp.le.s32.totalorder 1, %s18
      %p136 = scmp.lt.s32.totalorder %s18, 3
      %p137 = pnand %p135, %p136
      %p138 = pneg %p137
      // Predicated region
      $region21: #{tpu_custom_call.1} parent=5 // pred_check
        _
      $region22: #{tpu_custom_call.1} parent=5 // pred_check_branch
        %140 = sbr.rel (%p137) target = $region24
      $region23: #{tpu_custom_call.1} parent=5 // pred_region
        %s141 = ssub.s32 %s18, 1
        %s142 = sand.u32 %s31, 1
        %s143 = scalar_lea.sflag [#allocation3], %s142
        %s144 = sand.u32 %s31, 1
        %s145 = smul.addr %s144, 16
        %s146 = scalar_lea.vmem [#allocation2], %s145
        // Predicated region
        $region25: #{tpu_custom_call.1} parent=23 // pred_check
          %p147 = pneg %p44
        $region26: #{tpu_custom_call.1} parent=23 // pred_check_branch
          %149 = sbr.rel (%p147) target = $region28
        $region27: #{tpu_custom_call.1} parent=23 // pred_region
          %151 = dma.done %s143, 256
        $region28: #{tpu_custom_call.1} parent=23 // pred_fallthru
          _
        %s152 = sand.u32 %s31, 1
        %s153 = scalar_lea.sflag [#allocation3], %s152
        %s154 = sand.u32 %s31, 1
        %s155 = smul.addr %s154, 16
        %s156 = scalar_lea.vmem [#allocation2], %s155
        %p157 = pneg %p44
        %p158 = pneg %p41
        %p159 = pneg %p70
        %p160 = pneg %p67
        %s161 = sand.u32 %s57, 1
        %s162 = scalar_lea.sflag [#allocation4], %s161
        %s163 = sand.u32 %s57, 1
        %s164 = smul.addr %s163, 16
        %s165 = scalar_lea.vmem [#allocation5], %s164
        %p166 = pneg %p96
        %p167 = pneg %p93
        %s168 = sand.u32 %s83, 1
        %s169 = scalar_lea.sflag [#allocation7], %s168
        %s170 = sand.u32 %s83, 1
        %s171 = smul.addr %s170, 16
        %s172 = scalar_lea.vmem [#allocation6], %s171
        %v173 = vlaneseq
        %v174 = vand.u32 %v173, 127
        %v175 = vadd.s32 %v174, 128
        %s176 = smul.u32 0, 2
        %s177 = smul.addr %s176, 8
        %s178 = scalar_lea.vmem %s146, %s177 [#allocation2]
        %v179 = vld [vmem:[%s178] sm:$0xff]
        %v180 = vld [vmem:[%s178 + $0x8] sm:$0xff]
        %vm181 = vcmp.lt.s32.totalorder %v174, 8
        %vm182 = vcmp.lt.s32.totalorder %v175, 8
        %183 = vrot.lane.b32.xlu0 %v179, 8
        %v184 = vpop.permute.xlu0 %183
        %185 = vrot.lane.b32.xlu0 %v180, 8
        %v186 = vpop.permute.xlu0 %185
        %v187 = vsel %vm181, %v184, %v186
        %v188 = vsel %vm181, %v186, %v184
        %v189 = vsel %vm181, %v179, %v188
        %v190 = vsel %vm182, %v180, %v187
        %vm191 = vcmp.ge.s32.totalorder %v174, 248
        %vm192 = vcmp.ge.s32.totalorder %v175, 248
        %193 = vrot.lane.b32.xlu0 %v179, 120
        %v194 = vpop.permute.xlu0 %193
        %195 = vrot.lane.b32.xlu0 %v180, 120
        %v196 = vpop.permute.xlu0 %195
        %vm197 = vcmp.lt.s32.totalorder %v174, 120
        %v198 = vsel %vm197, %v194, %v196
        %v199 = vsel %vm197, %v196, %v194
        %v200 = vsel %vm191, %v179, %v198
        %v201 = vsel %vm192, %v180, %v199
        %v202 = vadd.f32 %v179, %v200
        %v203 = vadd.f32 %v180, %v201
        %v204 = vadd.f32 %v202, %v189
        %v205 = vadd.f32 %v203, %v190
        %206 = vrot.lane.b32.xlu0 %v179, 112
        %v207 = vpop.permute.xlu0 %206
        %208 = vrot.lane.b32.xlu0 %v180, 112
        %v209 = vpop.permute.xlu0 %208
        %vm210 = vcmp.lt.s32.totalorder %v174, 112
        %v211 = vsel %vm210, %v207, %v209
        %v212 = vsel %vm210, %v209, %v207
        %vm213 = vcmp.ge.s32.totalorder %v174, 240
        %vm214 = vcmp.ge.s32.totalorder %v175, 240
        %v215 = vsel %vm213, %v200, %v211
        %v216 = vsel %vm214, %v201, %v212
        %217 = vrot.lane.b32.xlu0 %v179, 16
        %v218 = vpop.permute.xlu0 %217
        %219 = vrot.lane.b32.xlu0 %v180, 16
        %v220 = vpop.permute.xlu0 %219
        %vm221 = vcmp.lt.s32.totalorder %v174, 16
        %v222 = vsel %vm221, %v218, %v220
        %v223 = vsel %vm221, %v220, %v218
        %vm224 = vcmp.lt.s32.totalorder %v175, 16
        %v225 = vsel %vm221, %v189, %v223
        %v226 = vsel %vm224, %v190, %v222
        %v227 = vadd.f32 %v204, %v215
        %v228 = vadd.f32 %v205, %v216
        %v229 = vadd.f32 %v227, %v225
        %v230 = vadd.f32 %v228, %v226
        %v231 = vmul.f32 %v229, 0.2
        %v232 = vmul.f32 %v230, 0.2
        %s233 = smul.addr %s176, 8
        %s234 = scalar_lea.vmem %s172, %s233 [#allocation6]
        %235 = vst [vmem:[%s234] sm:$0xff] %v231
        %236 = vst [vmem:[%s234 + $0x8] sm:$0xff] %v232
        %v237 = vsub.f32 %v179, %v231
        %v238 = vsub.f32 %v180, %v232
        %s239 = smul.addr %s176, 8
        %s240 = scalar_lea.vmem %s165, %s239 [#allocation5]
        %241 = vst [vmem:[%s240] sm:$0xff] %v237
        %242 = vst [vmem:[%s240 + $0x8] sm:$0xff] %v238
        %s243 = sand.u32 %s57, 1
        %s244 = scalar_lea.sflag [#allocation4], %s243
        %s245 = sand.u32 %s57, 1
        %s246 = smul.addr %s245, 16
        %s247 = scalar_lea.vmem [#allocation5], %s246
        %s248 = sand.u32 %s83, 1
        %s249 = scalar_lea.sflag [#allocation7], %s248
        %s250 = sand.u32 %s83, 1
        %s251 = smul.addr %s250, 16
        %s252 = scalar_lea.vmem [#allocation6], %s251
        // Predicated region
        $region29: #{tpu_custom_call.1} parent=23 // pred_check
          %p253 = pneg %p67
        $region30: #{tpu_custom_call.1} parent=23 // pred_check_branch
          %255 = sbr.rel (%p253) target = $region32
        $region31: #{tpu_custom_call.1} parent=23 // pred_region
          %257 = vsyncadd %s244, 0
          %s258 = smul.addr %s23, 2
          %s259 = smul.addr %s258, 8
          %s260 = scalar_lea.hbm %s1, %s259
          %s262 = sshll.u32 %s247, 4
          %s263 = int_to_ptr.vmem [resolvable:$true] %s262
          %s264 = sshll.u32 %s260, 4
          %s265 = int_to_ptr.hbm [resolvable:$true] %s264
          %267 = dma.vmem_to_hbm [thread:$0]  %s263, 256, %s265, %s244
        $region32: #{tpu_custom_call.1} parent=23 // pred_fallthru
          _
        // Predicated region
        $region33: #{tpu_custom_call.1} parent=23 // pred_check
          %p268 = pneg %p93
        $region34: #{tpu_custom_call.1} parent=23 // pred_check_branch
          %270 = sbr.rel (%p268) target = $region36
        $region35: #{tpu_custom_call.1} parent=23 // pred_region
          %272 = vsyncadd %s249, 0
          %s273 = smul.addr %s23, 2
          %s274 = smul.addr %s273, 8
          %s275 = scalar_lea.hbm %s2, %s274
          %s277 = sshll.u32 %s252, 4
          %s278 = int_to_ptr.vmem [resolvable:$true] %s277
          %s279 = sshll.u32 %s275, 4
          %s280 = int_to_ptr.hbm [resolvable:$true] %s279
          %282 = dma.vmem_to_hbm [thread:$0]  %s278, 256, %s280, %s249
        $region36: #{tpu_custom_call.1} parent=23 // pred_fallthru
          _
      $region24: #{tpu_custom_call.1} parent=5 // pred_fallthru
        _
      %p283 = scmp.le.s32.totalorder 2, %s18
      // Predicated region
      $region37: #{tpu_custom_call.1} parent=5 // pred_check
        %p284 = pneg %p283
      $region38: #{tpu_custom_call.1} parent=5 // pred_check_branch
        %286 = sbr.rel (%p284) target = $region40
      $region39: #{tpu_custom_call.1} parent=5 // pred_region
        %s287 = ssub.s32 %s18, 2
        // Predicated region
        $region41: #{tpu_custom_call.1} parent=39 // pred_check
          %p288 = pneg %p73
        $region42: #{tpu_custom_call.1} parent=39 // pred_check_branch
          %290 = sbr.rel (%p288) target = $region44
        $region43: #{tpu_custom_call.1} parent=39 // pred_region
          %s291 = sand.u32 %s58, 1
          %s292 = scalar_lea.sflag [#allocation4], %s291
          %s293 = sand.u32 %s58, 1
          %s294 = smul.addr %s293, 16
          %s295 = scalar_lea.vmem [#allocation5], %s294
          %297 = dma.done %s292, 256
        $region44: #{tpu_custom_call.1} parent=39 // pred_fallthru
          _
        // Predicated region
        $region45: #{tpu_custom_call.1} parent=39 // pred_check
          %p298 = pneg %p99
        $region46: #{tpu_custom_call.1} parent=39 // pred_check_branch
          %300 = sbr.rel (%p298) target = $region48
        $region47: #{tpu_custom_call.1} parent=39 // pred_region
          %s301 = sand.u32 %s84, 1
          %s302 = scalar_lea.sflag [#allocation7], %s301
          %s303 = sand.u32 %s84, 1
          %s304 = smul.addr %s303, 16
          %s305 = scalar_lea.vmem [#allocation6], %s304
          %307 = dma.done %s302, 256
        $region48: #{tpu_custom_call.1} parent=39 // pred_fallthru
          _
      $region40: #{tpu_custom_call.1} parent=5 // pred_fallthru
        _
    $region6: #{tpu_custom_call.1} parent=1 // loop_footer
      %s22 = sadd.s32 1, %s18
    $region7: #{tpu_custom_call.1} parent=1 // loop_footer_branch
      %17 = sbr.rel target = $region3
    $region8: #{tpu_custom_call.1} parent=1 // loop_exit
      _
    %308 = vsyncpa [#allocation3], 1
    %s309 = scalar_lea.sflag [#allocation3], 1
    %310 = vsyncpa %s309, 1
    %311 = vsyncpa [#allocation4], 1
    %s312 = scalar_lea.sflag [#allocation4], 1
    %313 = vsyncpa %s312, 1
    %314 = vsyncpa [#allocation7], 1
    %s315 = scalar_lea.sflag [#allocation7], 1
    %316 = vsyncpa %s315, 1

</llo_original>
